<compile_context>
chip_gen: v7x
topology: tpu7x:2x2x1
jax: 0.10.0
libtpu: 0.0.40
codegen_flags: <defaults>
</compile_context>

<pallas_src>
import functools

import jax
import jax.numpy as jnp
from jax import lax
from jax.experimental import pallas as pl
from jax.experimental.pallas import tpu as pltpu

BANDWIDTHS = (10.0, 512.0)
_PAD_NORM = 1e30               # padded rows: exp(-0.5/bw * 1e30) == 0 in f32
_REF_TILE = 512                # reference (De) tile rows (multiple of 128)
_MAX_QUERY_TILE = 2048         # query tile width cap (lane-dense, mult of 128)
_N_SPLITS = 2                  # leading 'parallel' split of the reference axis
_VMEM_LIMIT = 32 * 1024 * 1024


def _round_up(x, m):
    return ((x + m - 1) // m) * m


def _gauss_sum(d):
    """sum_bw exp(-0.5/bw * d), written as chained adds (no zeros+loop filler)."""
    k = jnp.exp((-0.5 / BANDWIDTHS[0]) * d)
    for bw in BANDWIDTHS[1:]:
        k = k + jnp.exp((-0.5 / bw) * d)
    return k


# --------------------------- Pallas kernels ---------------------------------

def _fe_kernel(img_ref, w_ref, out_ref):
    # Stand-in for fe(model, images): one linear projection on the MXU.
    # Inputs are pre-cast bf16 in HBM; f32 accumulation; lane-dense output.
    out_ref[...] = jnp.dot(img_ref[...], w_ref[...],
                           preferred_element_type=jnp.float32)


def _kxx_kernel(di_ref, dj_ref, ni_ref, nj_ref, out_ref):
    """Hoisted De-only term.  Grid = (row tiles 'parallel', col tiles
    'arbitrary').  Per row tile we keep a lane-dense (1, TN) partial-sum block
    resident across the column sweep; Gram symmetry lets us skip j < i tiles
    and weight strictly-upper tiles by 2."""
    gi = pl.program_id(0)
    gj = pl.program_id(1)

    @pl.when(gj == 0)
    def _init():
        out_ref[...] = jnp.zeros_like(out_ref)

    @pl.when(gj >= gi)                      # symmetry: skip lower-triangle tiles
    def _compute():
        g = lax.dot_general(di_ref[...], dj_ref[...],
                            (((1,), (1,)), ((), ())),
                            preferred_element_type=jnp.float32)       # (TN, TN)
        # dxx[i,j] = ||De_i||^2 + ||De_j||^2 - 2 De_i.De_j   (clamped)
        d = jnp.maximum(ni_ref[...] + nj_ref[...] - 2.0 * g, 0.0)
        k = _gauss_sum(d)
        w = jnp.where(gj == gi, 1.0, 2.0)   # off-diagonal tiles count twice
        # Sublane reduce only; the cross-lane reduce + 1/N^2 happen once in JAX.
        out_ref[...] += w * jnp.sum(k, axis=0, keepdims=True)[None]


def _kxy_kernel(de_ref, dn_ref, x_ref, xn_ref, out_ref):
    """Per-query term.  Grid = (ref split 'parallel', query tiles 'parallel',
    De chunks 'arbitrary').  Accumulates column sums of the cross Gaussian
    kernel into a resident lane-dense (1, 1, TM) block; the final
    mean_xx + len(bw) - 2*mean combine is done in JAX on the partial sums."""
    ki = pl.program_id(2)

    @pl.when(ki == 0)
    def _init():
        out_ref[...] = jnp.zeros_like(out_ref)

    zz = lax.dot_general(de_ref[...], x_ref[...],
                         (((1,), (1,)), ((), ())),
                         preferred_element_type=jnp.float32)          # (TN, TM)
    # dxy[i,q] = ||De_i||^2 + ||X_q||^2 - 2 De_i.X_q
    d = jnp.maximum(dn_ref[...] + xn_ref[...] - 2.0 * zz, 0.0)
    k = _gauss_sum(d)
    out_ref[...] += jnp.sum(k, axis=0, keepdims=True)[None]           # (1,1,TM)


# --------------------------- wrappers ----------------------------------------

@jax.jit
def fe_pallas(images, w_bf16):
    """Feature extractor: flatten NCHW images, project to a lane-dense Dp."""
    b = images.shape[0]
    flat = images.reshape(b, -1).astype(jnp.bfloat16)     # precast: bf16 in HBM
    k = flat.shape[1]
    dp = w_bf16.shape[1]
    tb = 128 if b >= 128 else _round_up(b, 8)
    b_pad = _round_up(b, tb)
    if b_pad != b:
        flat = jnp.zeros((b_pad, k), jnp.bfloat16).at[:b].set(flat)
    out = pl.pallas_call(
        _fe_kernel,
        out_shape=jax.ShapeDtypeStruct((b_pad, dp), jnp.float32),
        grid_spec=pltpu.PrefetchScalarGridSpec(
            num_scalar_prefetch=0,
            grid=(b_pad // tb,),
            in_specs=[pl.BlockSpec((tb, k), lambda i: (i, 0)),
                      pl.BlockSpec((k, dp), lambda i: (0, 0))],
            out_specs=pl.BlockSpec((tb, dp), lambda i: (i, 0))),
        compiler_params=pltpu.CompilerParams(
            dimension_semantics=("parallel",),
            vmem_limit_bytes=_VMEM_LIMIT),
    )(flat, w_bf16)
    return out[:b]


@functools.partial(jax.jit, static_argnames=("n", "tn"))
def mean_kxx_pallas(de_bf16, dn_col, dn_row, *, n, tn):
    """mean over (N,N) of the De-only Gaussian kernel — computed once."""
    n_pad, dp = de_bf16.shape
    gn = n_pad // tn
    partials = pl.pallas_call(
        _kxx_kernel,
        out_shape=jax.ShapeDtypeStruct((gn, 1, tn), jnp.float32),
        grid_spec=pltpu.PrefetchScalarGridSpec(
            num_scalar_prefetch=0,
            grid=(gn, gn),
            in_specs=[pl.BlockSpec((tn, dp), lambda i, j: (i, 0)),
                      pl.BlockSpec((tn, dp), lambda i, j: (j, 0)),
                      pl.BlockSpec((tn, 1), lambda i, j: (i, 0)),
                      pl.BlockSpec((1, tn), lambda i, j: (0, j))],
            out_specs=pl.BlockSpec((1, 1, tn), lambda i, j: (i, 0, 0))),
        compiler_params=pltpu.CompilerParams(
            dimension_semantics=("parallel", "arbitrary"),
            vmem_limit_bytes=_VMEM_LIMIT),
    )(de_bf16, de_bf16, dn_col, dn_row)
    # Finalize in JAX: cross-lane + cross-tile reduce and the 1/N^2 mean.
    return jnp.sum(partials) * (1.0 / float(n * n))


@functools.partial(jax.jit, static_argnames=("n", "tn", "n_splits"))
def distance_pallas(de_bf16, dn_col, x_feats, mean_xx, *, n, tn, n_splits):
    """Per-query MMD-style distance against the (pre-padded) reference set."""
    m, dp = x_feats.shape
    tm = min(_MAX_QUERY_TILE, _round_up(m, 128))   # one (or very few) query tiles
    m_pad = _round_up(m, tm)
    x_pad = jnp.zeros((m_pad, dp), jnp.bfloat16).at[:m].set(
        x_feats.astype(jnp.bfloat16))              # precast: bf16 in HBM
    xn = jnp.sum(x_feats * x_feats, axis=1).astype(jnp.float32)
    xn_row = jnp.zeros((1, m_pad), jnp.float32).at[0, :m].set(xn)

    n_pad = de_bf16.shape[0]
    k_chunks = n_pad // (tn * n_splits)
    q_tiles = m_pad // tm

    partials = pl.pallas_call(
        _kxy_kernel,
        out_shape=jax.ShapeDtypeStruct((n_splits, 1, m_pad), jnp.float32),
        grid_spec=pltpu.PrefetchScalarGridSpec(
            num_scalar_prefetch=0,
            grid=(n_splits, q_tiles, k_chunks),    # reduction (De chunks) last
            in_specs=[
                pl.BlockSpec((tn, dp),
                             lambda s, qi, ki: (s * k_chunks + ki, 0)),
                pl.BlockSpec((tn, 1),
                             lambda s, qi, ki: (s * k_chunks + ki, 0)),
                pl.BlockSpec((tm, dp), lambda s, qi, ki: (qi, 0)),
                pl.BlockSpec((1, tm), lambda s, qi, ki: (0, qi)),
            ],
            out_specs=pl.BlockSpec((1, 1, tm), lambda s, qi, ki: (s, 0, qi))),
        compiler_params=pltpu.CompilerParams(
            dimension_semantics=("parallel", "parallel", "arbitrary"),
            vmem_limit_bytes=_VMEM_LIMIT),
    )(de_bf16, dn_col, x_pad, xn_row)

    # Combine the per-split partial column sums and finalize in JAX.
    kxy_colsum = jnp.sum(partials, axis=(0, 1))                     # (m_pad,)
    dist = mean_xx + float(len(BANDWIDTHS)) - 2.0 * (kxy_colsum / float(n))
    return dist[:m]


# --------------------------- Filter module -----------------------------------

class FilterPallas:
    """JAX/Pallas port of Inversion/prepare.py::Filter."""

    def __init__(self, fe_weight, de_data, dataset="MNIST"):
        if dataset == "MNIST":
            mean = jnp.array([0.1307], jnp.float32)
            std = jnp.array([0.3081], jnp.float32)
        elif dataset == "CIFAR10":
            mean = jnp.array([0.4914, 0.4822, 0.4465], jnp.float32)
            std = jnp.array([0.2023, 0.1994, 0.201], jnp.float32)
        elif dataset == "CIFAR20":
            mean = jnp.array([0.5071, 0.4868, 0.4408], jnp.float32)
            std = jnp.array([0.2675, 0.2565, 0.2761], jnp.float32)
        else:
            raise ValueError(f"{dataset} is not ready for Filter!")

        if de_data.ndim >= 4:
            de_data = jnp.transpose(de_data, (0, 3, 1, 2))   # NHWC -> NCHW
        else:
            de_data = de_data[:, None]                        # add channel dim

        # TODO(synk): RandomCrop / RandomHorizontalFlip / RandomRotation are
        # stochastic host-side augmentations with no Pallas equivalent; only
        # the deterministic Normalize is applied here.
        norm = (de_data.astype(jnp.float32) / 255.0
                - mean[None, :, None, None]) / std[None, :, None, None]
        self.De = jnp.concatenate([norm for _ in range(5)], axis=0)

        # Pad feature dim to a multiple of 128 (lane-dense fe output; the zero
        # columns are exact no-ops for norms and Gram matmuls) and precast the
        # weight to bf16 (it is consumed as bf16 by the MXU anyway).
        d = fe_weight.shape[1]
        dp = _round_up(d, 128)
        w = jnp.zeros((fe_weight.shape[0], dp), jnp.float32)
        w = w.at[:, :d].set(fe_weight.astype(jnp.float32))
        self.fe_weight = w.astype(jnp.bfloat16)

        self.features = None
        self._de_bf16 = None
        self._dn_col = None
        self._mean_kxx = None
        self._n = None
        self._tn = None

    def _prepare_features(self):
        if self.features is not None:
            return
        feats = fe_pallas(self.De, self.fe_weight)            # (N, Dp) f32
        n, dp = feats.shape
        # Reference tile rows: multiple of 128 so every streamed / output block
        # is lane- and sublane-aligned even for tiny N.
        tn = min(_REF_TILE, _round_up(n, 128))
        n_pad = _round_up(n, tn * _N_SPLITS)
        # Streamed De copy lives in HBM as bf16 (halves DMA bytes + VMEM tiles).
        de_bf16 = jnp.zeros((n_pad, dp), jnp.bfloat16).at[:n].set(
            feats.astype(jnp.bfloat16))
        norms = jnp.sum(feats * feats, axis=1)                # f32 norms
        # Padded rows get a huge f32 squared norm so exp(-0.5/bw * d) == 0
        # exactly; no masking needed inside the kernels.
        norms_pad = jnp.full((n_pad,), _PAD_NORM, jnp.float32).at[:n].set(norms)

        self.features = feats
        self._de_bf16 = de_bf16
        self._dn_col = norms_pad[:, None]                     # (N_pad, 1) f32
        self._n, self._tn = n, tn
        # De-only term: computed exactly once, reused for every forward().
        self._mean_kxx = mean_kxx_pallas(de_bf16, self._dn_col,
                                         norms_pad[None, :], n=n, tn=tn)

    def forward(self, x):
        self._prepare_features()
        x_feats = fe_pallas(x, self.fe_weight)
        # One gridded launch over all queries; De is streamed from HBM once.
        return distance_pallas(self._de_bf16, self._dn_col, x_feats,
                               self._mean_kxx, n=self._n, tn=self._tn,
                               n_splits=_N_SPLITS)


# --------------------------- reference (pure JAX) ----------------------------

def _ref_forward(de_norm, x, w):
    """Same algorithm / same numerics (bf16 MXU inputs, f32 elsewhere)."""
    def fe(a):
        flat = a.reshape(a.shape[0], -1).astype(jnp.float32)
        return jnp.dot(flat.astype(jnp.bfloat16), w.astype(jnp.bfloat16),
                       preferred_element_type=jnp.float32)
    De = fe(de_norm)
    X = fe(x)
    xx = jnp.dot(De.astype(jnp.bfloat16), De.astype(jnp.bfloat16).T,
                 preferred_element_type=jnp.float32)
    zz = jnp.dot(De.astype(jnp.bfloat16), X.astype(jnp.bfloat16).T,
                 preferred_element_type=jnp.float32)
    dn = jnp.sum(De * De, axis=1)
    xn = jnp.sum(X * X, axis=1)
    dxx = jnp.maximum(dn[:, None] + dn[None, :] - 2.0 * xx, 0.0)
    dxy = jnp.maximum(dn[:, None] + xn[None, :] - 2.0 * zz, 0.0)
    kxx = sum(jnp.exp(-0.5 / bw * dxx) for bw in BANDWIDTHS)
    kxy = sum(jnp.exp(-0.5 / bw * dxy) for bw in BANDWIDTHS)
    return jnp.mean(kxx) + float(len(BANDWIDTHS)) - 2.0 * jnp.mean(kxy, axis=0)


# --------------------------- main ---------------------------------------------

if __name__ == "__main__":
    key = jax.random.PRNGKey(0)
    k1, k2, k3 = jax.random.split(key, 3)

    N0, C, H, W, D, M = 8, 1, 16, 16, 32, 8
    # MNIST-style raw uint8 images, rank 3 (< 4 dims -> channel dim is added).
    de_data = jax.random.randint(k1, (N0, H, W), 0, 256).astype(jnp.float32)
    # Query batch, already NCHW.
    x = jax.random.randint(k2, (M, C, H, W), 0, 256).astype(jnp.float32) / 255.0
    # Deterministic feature-extractor weight (C*H*W -> D).
    fe_weight = (0.02 * jax.random.normal(k3, (C * H * W, D))).astype(jnp.float32)

    filt = FilterPallas(fe_weight, de_data, dataset="MNIST")
    result = jax.block_until_ready(filt.forward(x))

    ref = _ref_forward(filt.De, x, fe_weight)
    assert result.shape == (M,)
    assert jnp.allclose(result, ref, rtol=1e-3, atol=1e-3), (result, ref)

    print("KERNEL_OK")
</pallas_src>

<mosaic_0001>
module attributes {stable_mosaic.version = 11 : i64} {
  func.func @_fe_kernel(%arg0: i32, %arg1: memref<40x256xbf16, #tpu.memory_space<vmem>>, %arg2: memref<256x128xbf16, #tpu.memory_space<vmem>>, %arg3: memref<40x128xf32, #tpu.memory_space<vmem>>) attributes {dimension_semantics = [#tpu.dimension_semantics<parallel>], iteration_bounds = array<i64: 1>, scalar_prefetch = 0 : i64, scratch_operands = 0 : i64, tpu.core_type = #tpu.core_type<tc>, window_params = [{transform_indices = @transform_0, window_bounds = array<i64: 40, 256>}, {pipeline_mode = #tpu.pipeline_mode<synchronous>, transform_indices = @transform_1, window_bounds = array<i64: 256, 128>}, {transform_indices = @transform_2, window_bounds = array<i64: 40, 128>}]} {
    %c0 = arith.constant 0 : index
    %c0_0 = arith.constant 0 : index
    %0 = vector.load %arg1[%c0, %c0_0] : memref<40x256xbf16, #tpu.memory_space<vmem>>, vector<40x256xbf16>
    %c0_1 = arith.constant 0 : index
    %c0_2 = arith.constant 0 : index
    %1 = vector.load %arg2[%c0_1, %c0_2] : memref<256x128xbf16, #tpu.memory_space<vmem>>, vector<256x128xbf16>
    %cst = arith.constant dense<0.000000e+00> : vector<40x128xf32>
    %2 = tpu.matmul %0, %1, %cst {dimension_numbers = #tpu.dot_dimension_numbers<[1], [0], [0], [1], [0, 0, 1, 1], [], []>} : vector<40x256xbf16>, vector<256x128xbf16>, vector<40x128xf32> -> vector<40x128xf32>
    %c0_3 = arith.constant 0 : index
    %c0_4 = arith.constant 0 : index
    %3 = vector.load %arg3[%c0_3, %c0_4] : memref<40x128xf32, #tpu.memory_space<vmem>>, vector<40x128xf32>
    tpu.vector_store %arg3[%c0_3, %c0_4], %2 {strides = array<i32>} : memref<40x128xf32, #tpu.memory_space<vmem>>, vector<40x128xf32>,
    return
  }
  func.func @transform_0(%arg0: i32) -> (i32, i32) {
    %c0_i32 = arith.constant 0 : i32
    %c0_i32_0 = arith.constant 0 : i32
    return %arg0, %c0_i32 : i32, i32
  }
  func.func @transform_1(%arg0: i32) -> (i32, i32) {
    %c0_i32 = arith.constant 0 : i32
    %c0_i32_0 = arith.constant 0 : i32
    %c0_i32_1 = arith.constant 0 : i32
    return %c0_i32, %c0_i32_0 : i32, i32
  }
  func.func @transform_2(%arg0: i32) -> (i32, i32) {
    %c0_i32 = arith.constant 0 : i32
    %c0_i32_0 = arith.constant 0 : i32
    return %arg0, %c0_i32 : i32, i32
  }
}

</mosaic_0001>

<llo_original>
// kernel: fe_pallas.1
$region0: #{fe_pallas.1}
  #allocation0 [shape = 'u32[]', space=smem, size = 0x4, offset = 0x4, fixed_abs, tag = 'smem constant byte address 0x4 - core index']
  #allocation1 [shape = 'u32[144,128]{1,0:T(1,128)}', space=vmem, size = 0x12000, scoped, tag = 'internal scratch']
  %s0 = inlined_call_operand.vmem [shape: bf16[40,256], index: 0, kind: input, shape index: {}]
  %s1 = inlined_call_operand.vmem [shape: bf16[256,128], index: 1, kind: input, shape index: {}]
  %s2 = inlined_call_operand.hbm [shape: f32[40,128], index: 2, kind: output, shape index: {}]
  %s3 = sld [smem:[#allocation0]]
  $region18: #{fe_pallas.1} parent=0
    _
  %s5 = ssub.s32 1, %s3
  %s6 = scalar_select 0, %s5, %s3
  $region1: #{fe_pallas.1} parent=0
    #allocation2 [shape = 'u8[20480]{0}', space=vmem, size = 0x5000, scoped, tag = 'output window, operand 0, single buffered']
    #allocation3 [shape = 's32[1]{0}', space=sflag, size = 0x4, scoped, tag = 'scoped memory for fe_pallas.1']
    %7 = vsyncpa [#allocation3], 0
    // Predicated region
    $region2: #{fe_pallas.1} parent=1 // pred_check
      _
    $region3: #{fe_pallas.1} parent=1 // pred_check_branch
      %9 = sbr.rel (0) target = $region5
    $region4: #{fe_pallas.1} parent=1 // pred_region
      _
    $region5: #{fe_pallas.1} parent=1 // pred_fallthru
      _
    // Predicated region
    $region6: #{fe_pallas.1} parent=1 // pred_check
      _
    $region7: #{fe_pallas.1} parent=1 // pred_check_branch
      %11 = sbr.rel (0) target = $region9
    $region8: #{fe_pallas.1} parent=1 // pred_region
      _
    $region9: #{fe_pallas.1} parent=1 // pred_fallthru
      _
    %v13 = vld [vmem:[%s0] sm:$0xff]
    %v14 = vld [vmem:[%s0 + $0x8] sm:$0xff]
    %v15 = vld [vmem:[%s0 + $0x10] sm:$0xff]
    %v16 = vld [vmem:[%s0 + $0x18] sm:$0xff]
    %v17 = vld [vmem:[%s0 + $0x20] sm:$0xff]
    %v18 = vld [vmem:[%s1] sm:$0xf]
    %v19 = vld [vmem:[%s1 + $0x4] sm:$0xf]
    %v20 = vld [vmem:[%s1 + $0x8] sm:$0xf]
    %v21 = vld [vmem:[%s1 + $0xc] sm:$0xf]
    %v22 = vld [vmem:[%s1 + $0x10] sm:$0xf]
    %v23 = vld [vmem:[%s1 + $0x14] sm:$0xf]
    %v24 = vld [vmem:[%s1 + $0x18] sm:$0xf]
    %v25 = vld [vmem:[%s1 + $0x1c] sm:$0xf]
    %v26 = vld [vmem:[%s1 + $0x20] sm:$0xf]
    %v27 = vld [vmem:[%s1 + $0x24] sm:$0xf]
    %v28 = vld [vmem:[%s1 + $0x28] sm:$0xf]
    %v29 = vld [vmem:[%s1 + $0x2c] sm:$0xf]
    %v30 = vld [vmem:[%s1 + $0x30] sm:$0xf]
    %v31 = vld [vmem:[%s1 + $0x34] sm:$0xf]
    %v32 = vld [vmem:[%s1 + $0x38] sm:$0xf]
    %v33 = vld [vmem:[%s1 + $0x3c] sm:$0xf]
    %v34 = vld [vmem:[%s1 + $0x40] sm:$0xf]
    %v35 = vld [vmem:[%s1 + $0x44] sm:$0xf]
    %v36 = vld [vmem:[%s1 + $0x48] sm:$0xf]
    %v37 = vld [vmem:[%s1 + $0x4c] sm:$0xf]
    %v38 = vld [vmem:[%s1 + $0x50] sm:$0xf]
    %v39 = vld [vmem:[%s1 + $0x54] sm:$0xf]
    %v40 = vld [vmem:[%s1 + $0x58] sm:$0xf]
    %v41 = vld [vmem:[%s1 + $0x5c] sm:$0xf]
    %v42 = vld [vmem:[%s1 + $0x60] sm:$0xf]
    %v43 = vld [vmem:[%s1 + $0x64] sm:$0xf]
    %v44 = vld [vmem:[%s1 + $0x68] sm:$0xf]
    %v45 = vld [vmem:[%s1 + $0x6c] sm:$0xf]
    %v46 = vld [vmem:[%s1 + $0x70] sm:$0xf]
    %v47 = vld [vmem:[%s1 + $0x74] sm:$0xf]
    %v48 = vld [vmem:[%s1 + $0x78] sm:$0xf]
    %v49 = vld [vmem:[%s1 + $0x7c] sm:$0xf]
    %v55 = vunpack.c.l.b16 %v13
    %v56 = vunpack.c.h.b16 %v13
    %v57 = vunpack.c.l.b16 %v14
    %v58 = vunpack.c.h.b16 %v14
    %v59 = vunpack.c.l.b16 %v15
    %v60 = vunpack.c.h.b16 %v15
    %v61 = vunpack.c.l.b16 %v16
    %v62 = vunpack.c.h.b16 %v16
    %v63 = vunpack.c.l.b16 %v17
    %v64 = vunpack.c.h.b16 %v17
    %v65 = vpack.c.b16 %v57, %v55
    %v66 = vpack.c.b16 %v58, %v56
    %v67 = vpack.c.b16 %v61, %v59
    %v68 = vpack.c.b16 %v62, %v60
    %v69 = vpack.c.b16 %v63, %v63
    %v70 = vpack.c.b16 %v64, %v64
    %v109 = vunpack.c.l.b16 %v18
    %v110 = vunpack.c.l.b16 %v19
    %v111 = vunpack.c.l.b16 %v20
    %v112 = vunpack.c.l.b16 %v21
    %v113 = vunpack.c.l.b16 %v22
    %v114 = vunpack.c.l.b16 %v23
    %v115 = vunpack.c.l.b16 %v24
    %v116 = vunpack.c.l.b16 %v25
    %v117 = vunpack.c.l.b16 %v26
    %v118 = vunpack.c.l.b16 %v27
    %v119 = vunpack.c.l.b16 %v28
    %v120 = vunpack.c.l.b16 %v29
    %v121 = vunpack.c.l.b16 %v30
    %v122 = vunpack.c.l.b16 %v31
    %v123 = vunpack.c.l.b16 %v32
    %v124 = vunpack.c.l.b16 %v33
    %v125 = vunpack.c.l.b16 %v34
    %v126 = vunpack.c.l.b16 %v35
    %v127 = vunpack.c.l.b16 %v36
    %v128 = vunpack.c.l.b16 %v37
    %v129 = vunpack.c.l.b16 %v38
    %v130 = vunpack.c.l.b16 %v39
    %v131 = vunpack.c.l.b16 %v40
    %v132 = vunpack.c.l.b16 %v41
    %v133 = vunpack.c.l.b16 %v42
    %v134 = vunpack.c.l.b16 %v43
    %v135 = vunpack.c.l.b16 %v44
    %v136 = vunpack.c.l.b16 %v45
    %v137 = vunpack.c.l.b16 %v46
    %v138 = vunpack.c.l.b16 %v47
    %v139 = vunpack.c.l.b16 %v48
    %v140 = vunpack.c.l.b16 %v49
    %v141 = vpack.c.b16 %v110, %v109
    %v142 = vpack.c.b16 %v112, %v111
    %v143 = vpack.c.b16 %v114, %v113
    %v144 = vpack.c.b16 %v116, %v115
    %v145 = vpack.c.b16 %v118, %v117
    %v146 = vpack.c.b16 %v120, %v119
    %v147 = vpack.c.b16 %v122, %v121
    %v148 = vpack.c.b16 %v124, %v123
    %v149 = vpack.c.b16 %v126, %v125
    %v150 = vpack.c.b16 %v128, %v127
    %v151 = vpack.c.b16 %v130, %v129
    %v152 = vpack.c.b16 %v132, %v131
    %v153 = vpack.c.b16 %v134, %v133
    %v154 = vpack.c.b16 %v136, %v135
    %v155 = vpack.c.b16 %v138, %v137
    %v156 = vpack.c.b16 %v140, %v139
    %173 = vmatprep.subr.bf16.mxu0 0
    %174 = vmatpush1.bf16.msra.mxu0 %v141
    %175 = vmatprep.subr.bf16.mxu0 0
    %176 = vmatpush1.bf16.msra.mxu0 %v142
    %177 = vmatprep.subr.bf16.mxu0 0
    %178 = vmatpush1.bf16.msra.mxu0 %v143
    %179 = vmatprep.subr.bf16.mxu0 0
    %180 = vmatpush1.bf16.msra.mxu0 %v144
    %181 = vmatprep.subr.bf16.mxu0 0
    %182 = vmatpush1.bf16.msra.mxu0 %v145
    %183 = vmatprep.subr.bf16.mxu0 0
    %184 = vmatpush1.bf16.msra.mxu0 %v146
    %185 = vmatprep.subr.bf16.mxu0 0
    %186 = vmatpush1.bf16.msra.mxu0 %v147
    %187 = vmatprep.subr.bf16.mxu0 0
    %188 = vmatpush1.bf16.msra.mxu0 %v148
    %189 = vmatprep.subr.bf16.mxu0 0
    %190 = vmatpush1.bf16.msra.mxu0 %v149
    %191 = vmatprep.subr.bf16.mxu0 0
    %192 = vmatpush1.bf16.msra.mxu0 %v150
    %193 = vmatprep.subr.bf16.mxu0 0
    %194 = vmatpush1.bf16.msra.mxu0 %v151
    %195 = vmatprep.subr.bf16.mxu0 0
    %196 = vmatpush1.bf16.msra.mxu0 %v152
    %197 = vmatprep.subr.bf16.mxu0 0
    %198 = vmatpush1.bf16.msra.mxu0 %v153
    %199 = vmatprep.subr.bf16.mxu0 0
    %200 = vmatpush1.bf16.msra.mxu0 %v154
    %201 = vmatprep.subr.bf16.mxu0 0
    %202 = vmatpush1.bf16.msra.mxu0 %v155
    %203 = vmatprep.subr.bf16.mxu0 0
    %204 = vmatpush1.bf16.msra.mxu0 %v156
    %205 = vmatprep.mubr.bf16.mxu0 %v66
    %206 = vmatmul.mubr.bf16.gmra.mrb[0].mxu0 %v65
    %v207 = vpop.f32.mrb[0].mxu0
    %v208 = vadd.f32 0.0, %v207
    %v209 = vpop.f32.mrb[0].mxu0
    %v210 = vpop.f32.mrb[0].mxu0
    %v211 = vadd.f32 0.0, %v210
    %v212 = vpop.f32.mrb[0].mxu0
    %213 = vmatprep.mubr.bf16.mxu0 %v68
    %214 = vmatmul.mubr.bf16.gmra.mrb[0].mxu0 %v67
    %v215 = vpop.f32.mrb[0].mxu0
    %v216 = vadd.f32 0.0, %v215
    %v217 = vpop.f32.mrb[0].mxu0
    %v218 = vpop.f32.mrb[0].mxu0
    %v219 = vadd.f32 0.0, %v218
    %v220 = vpop.f32.mrb[0].mxu0
    %221 = vmatprep.mubr.bf16.mxu0 %v70
    %222 = vmatmul.mubr.bf16.gmra.mrb[0].mxu0 %v69
    %v223 = vpop.f32.mrb[0].mxu0
    %v224 = vadd.f32 0.0, %v223
    %v225 = vpop.f32.mrb[0].mxu0
    %v226 = vpop.f32.mrb[0].mxu0
    %v227 = vpop.f32.mrb[0].mxu0
    %228 = vdwg.mxu0
    %229 = vst [vmem:[#allocation2] sm:$0xff] %v208
    %230 = vst [vmem:[#allocation2 + $0x8] sm:$0xff] %v211
    %231 = vst [vmem:[#allocation2 + $0x10] sm:$0xff] %v216
    %232 = vst [vmem:[#allocation2 + $0x18] sm:$0xff] %v219
    %233 = vst [vmem:[#allocation2 + $0x20] sm:$0xff] %v224
    // Predicated region
    $region10: #{fe_pallas.1} parent=1 // pred_check
      _
    $region11: #{fe_pallas.1} parent=1 // pred_check_branch
      %235 = sbr.rel (0) target = $region13
    $region12: #{fe_pallas.1} parent=1 // pred_region
      %s237 = ssub.s32 640, 640
      %238 = vsyncadd [#allocation3], %s237
      %s239 = sshll.u32 [#allocation2], 4
      %s240 = int_to_ptr.vmem [resolvable:$true] %s239
      %245 = dma.vmem_to_hbm [thread:$0]  %s240, 640, %s2, [#allocation3], 128, 128, 8
    $region13: #{fe_pallas.1} parent=1 // pred_fallthru
      _
    // Predicated region
    $region14: #{fe_pallas.1} parent=1 // pred_check
      _
    $region15: #{fe_pallas.1} parent=1 // pred_check_branch
      %247 = sbr.rel (0) target = $region17
    $region16: #{fe_pallas.1} parent=1 // pred_region
      %248 = dma.done [#allocation3], 640
    $region17: #{fe_pallas.1} parent=1 // pred_fallthru
      _
    %249 = vsyncpa [#allocation3], 1

</llo_original>
